<compile_context>
chip_gen: v6e
topology: v6e:2x2x1
jax: 0.10.0
libtpu: 0.0.40
codegen_flags: <defaults>
</compile_context>

<pallas_src>
import math

import jax
import jax.numpy as jnp
from jax import lax
from jax.experimental import pallas as pl
from jax.experimental.pallas import tpu as pltpu

_MiB = 1024 * 1024


def _tpu_generation():
    """Best-effort TPU generation (5, 6, 7, ...); 0 if unknown."""
    try:
        kind = jax.devices()[0].device_kind.lower()
    except Exception:
        return 0
    for g in (7, 6, 5, 4, 3, 2):
        if f"v{g}" in kind:
            return g
    return 0


def _vmem_budget_bytes():
    """Generation-aware usable VMEM budget (~75% of physical per core)."""
    try:
        cap = int(pltpu.get_tpu_info().vmem_capacity_bytes)
        if cap > 0:
            return int(0.75 * cap)          # ~96 MiB v5e/v6e, ~48 MiB v7x
    except Exception:
        pass
    return 64 * _MiB                        # safe on every generation


def _vmem_limit(nbytes_estimate):
    # 2x headroom for double buffering / compiler scratch, capped at budget.
    return int(min(_vmem_budget_bytes(), max(16 * _MiB, 2 * int(nbytes_estimate))))


def _pick_tile(n, cap, min_steps=1):
    """Largest multiple-of-8 tile that divides n, is <= cap, and (if possible)
    leaves at least `min_steps` grid steps along this axis (megacore)."""
    cap = min(cap, n)
    if min_steps > 1 and n // min_steps >= 8:
        cap = min(cap, n // min_steps)
    for t in (512, 256, 128, 64, 32, 16, 8):
        if t <= cap and n % t == 0:
            return t
    return n  # tiny / odd sizes: use the full extent (valid: equals array dim)


# --------------------------------------------------------------------------
# Kernel 1: fused Q/K/V projection (x read from HBM once, one launch).
#   x_ref: (TM, Din); w*_ref: (Din, TN) pre-transposed; b_ref: (3, TN);
#   outputs: three (TM, TN) tiles.  Standard contraction -> no RHS relayout.
# --------------------------------------------------------------------------
def _qkv_proj_kernel(x_ref, wq_ref, wk_ref, wv_ref, b_ref, q_ref, k_ref, v_ref):
    x = x_ref[...]
    q = jnp.dot(x, wq_ref[...], preferred_element_type=jnp.float32)
    k = jnp.dot(x, wk_ref[...], preferred_element_type=jnp.float32)
    v = jnp.dot(x, wv_ref[...], preferred_element_type=jnp.float32)
    q_ref[...] = (q + b_ref[0:1, :]).astype(q_ref.dtype)
    k_ref[...] = (k + b_ref[1:2, :]).astype(k_ref.dtype)
    v_ref[...] = (v + b_ref[2:3, :]).astype(v_ref.dtype)


def pallas_qkv_proj(x2d, wq_t, wk_t, wv_t, b_qkv):
    """x2d: (M, Din); w*_t: (Din, D); b_qkv: (3, D) -> three (M, D) arrays."""
    M, Din = x2d.shape
    D = wq_t.shape[1]
    TM = _pick_tile(M, 512, min_steps=2)
    TN = _pick_tile(D, 512)
    isz = jnp.dtype(x2d.dtype).itemsize
    est = (2 * isz * (TM * Din + 3 * Din * TN + 3 * TN + 3 * TM * TN)
           + 4 * 3 * TM * TN)                       # f32 accumulators
    out = jax.ShapeDtypeStruct((M, D), x2d.dtype)
    # N (weight tile) is the OUTER grid axis so weight tiles stay resident
    # across the inner M sweep; only the (smaller) activation tile is re-read.
    return pl.pallas_call(
        _qkv_proj_kernel,
        out_shape=(out, out, out),
        grid=(D // TN, M // TM),
        in_specs=[
            pl.BlockSpec((TM, Din), lambda j, i: (i, 0)),
            pl.BlockSpec((Din, TN), lambda j, i: (0, j)),
            pl.BlockSpec((Din, TN), lambda j, i: (0, j)),
            pl.BlockSpec((Din, TN), lambda j, i: (0, j)),
            pl.BlockSpec((3, TN), lambda j, i: (0, j)),
        ],
        out_specs=(
            pl.BlockSpec((TM, TN), lambda j, i: (i, j)),
            pl.BlockSpec((TM, TN), lambda j, i: (i, j)),
            pl.BlockSpec((TM, TN), lambda j, i: (i, j)),
        ),
        compiler_params=pltpu.CompilerParams(
            dimension_semantics=("parallel", "parallel"),
            vmem_limit_bytes=_vmem_limit(est),
        ),
    )(x2d, wq_t, wk_t, wv_t, b_qkv)


# --------------------------------------------------------------------------
# Kernel 2: plain Linear (out_proj).  y = x @ W_t + b, tiled over M and N.
# --------------------------------------------------------------------------
def _linear_kernel(x_ref, w_ref, b_ref, o_ref):
    y = jnp.dot(x_ref[...], w_ref[...], preferred_element_type=jnp.float32)
    o_ref[...] = (y + b_ref[...]).astype(o_ref.dtype)


def pallas_linear(x2d, w_t, b):
    """x2d: (M, Din), w_t: (Din, Dout) pre-transposed, b: (Dout,)."""
    M, Din = x2d.shape
    Dout = w_t.shape[1]
    TM = _pick_tile(M, 512, min_steps=2)
    TN = _pick_tile(Dout, 512)
    isz = jnp.dtype(x2d.dtype).itemsize
    est = 2 * isz * (TM * Din + Din * TN + TN + TM * TN) + 4 * TM * TN
    return pl.pallas_call(
        _linear_kernel,
        out_shape=jax.ShapeDtypeStruct((M, Dout), x2d.dtype),
        grid=(Dout // TN, M // TM),
        in_specs=[
            pl.BlockSpec((TM, Din), lambda j, i: (i, 0)),
            pl.BlockSpec((Din, TN), lambda j, i: (0, j)),
            pl.BlockSpec((1, TN), lambda j, i: (0, j)),
        ],
        out_specs=pl.BlockSpec((TM, TN), lambda j, i: (i, j)),
        compiler_params=pltpu.CompilerParams(
            dimension_semantics=("parallel", "parallel"),
            vmem_limit_bytes=_vmem_limit(est),
        ),
    )(x2d, w_t, b.reshape(1, Dout))


# --------------------------------------------------------------------------
# Kernel 3: flash-style scaled dot-product attention.
#   Grid (B, L//TQ, L//TKV); all H heads handled per step (batched matmuls).
#   Running max / sum / accumulator live in VMEM scratch across the KV axis.
#   1/sqrt(d) is already folded into the Q projection weights.
# --------------------------------------------------------------------------
def _flash_attn_kernel(q_ref, k_ref, v_ref, o_ref, m_sc, l_sc, acc_sc):
    # q_ref, o_ref: (H, TQ, d); k_ref, v_ref: (H, TKV, d)
    kv = pl.program_id(2)

    @pl.when(kv == 0)
    def _init():
        m_sc[...] = jnp.full(m_sc.shape, -jnp.inf, m_sc.dtype)
        l_sc[...] = jnp.zeros(l_sc.shape, l_sc.dtype)
        acc_sc[...] = jnp.zeros(acc_sc.shape, acc_sc.dtype)

    q = q_ref[...]           # scale folded into wq/bq at param-prep time
    k = k_ref[...]
    v = v_ref[...]

    # scores: (H, TQ, d) x (H, TKV, d) -> (H, TQ, TKV), f32 accumulation on MXU
    s = lax.dot_general(q, k, (((2,), (2,)), ((0,), (0,))),
                        preferred_element_type=jnp.float32)

    m_prev = m_sc[...]
    m_new = jnp.maximum(m_prev, jnp.max(s, axis=-1, keepdims=True))
    alpha = jnp.exp(m_prev - m_new)
    p = jnp.exp(s - m_new)
    l_sc[...] = alpha * l_sc[...] + jnp.sum(p, axis=-1, keepdims=True)
    pv = lax.dot_general(p.astype(v.dtype), v, (((2,), (1,)), ((0,), (0,))),
                         preferred_element_type=jnp.float32)
    acc_sc[...] = alpha * acc_sc[...] + pv
    m_sc[...] = m_new

    @pl.when(kv == pl.num_programs(2) - 1)
    def _finalize():
        # approx reciprocal (EUP) only on the low-precision path; exact on f32.
        approx = jnp.dtype(o_ref.dtype) != jnp.dtype(jnp.float32)
        inv_l = pl.reciprocal(l_sc[...], approx=bool(approx))
        o_ref[...] = (acc_sc[...] * inv_l).astype(o_ref.dtype)


def pallas_flash_attention(Q, K, V):
    """Q, K, V: (B, H, L, d) -> (B, H, L, d)."""
    B, H, L, d = Q.shape
    gen = _tpu_generation()
    tile_cap = 256 if (gen == 0 or gen >= 6) else 128   # 2x256^2 MXU vs 4x128^2
    TQ = _pick_tile(L, tile_cap)
    TKV = _pick_tile(L, tile_cap)
    isz = jnp.dtype(Q.dtype).itemsize
    est = (2 * isz * (2 * H * TQ * d + 2 * H * TKV * d)     # q/o + k/v tiles (x2 buf)
           + 4 * (2 * H * TQ + H * TQ * d)                   # m, l, acc scratch (f32)
           + 4 * H * TQ * TKV)                               # transient f32 score tile

    q_spec = pl.BlockSpec((None, H, TQ, d), lambda b, qi, kv: (b, 0, qi, 0))
    kv_spec = pl.BlockSpec((None, H, TKV, d), lambda b, qi, kv: (b, 0, kv, 0))
    o_spec = pl.BlockSpec((None, H, TQ, d), lambda b, qi, kv: (b, 0, qi, 0))

    return pl.pallas_call(
        _flash_attn_kernel,
        out_shape=jax.ShapeDtypeStruct((B, H, L, d), Q.dtype),
        grid=(B, L // TQ, L // TKV),
        in_specs=[q_spec, kv_spec, kv_spec],
        out_specs=o_spec,
        scratch_shapes=[
            pltpu.VMEM((H, TQ, 1), jnp.float32),  # running max
            pltpu.VMEM((H, TQ, 1), jnp.float32),  # running sum
            pltpu.VMEM((H, TQ, d), jnp.float32),  # output accumulator
        ],
        compiler_params=pltpu.CompilerParams(
            dimension_semantics=("parallel", "parallel", "arbitrary"),
            vmem_limit_bytes=_vmem_limit(est),
        ),
    )(Q, K, V)


# --------------------------------------------------------------------------
# Param packaging (done ONCE, outside the forward): transpose weights to
# (Din, Dout), fold 1/sqrt(d) into wq/bq in f32, stack q/k/v biases, and
# optionally cast to the MXU compute dtype (bf16 on v6e/v7x).
# --------------------------------------------------------------------------
def prepare_params(params, num_heads, compute_dtype=None):
    D = params["wq"].shape[0]
    d = D // num_heads
    scale = 1.0 / math.sqrt(d)
    out_dtype = compute_dtype if compute_dtype is not None else params["wq"].dtype
    f32 = lambda a: a.astype(jnp.float32)
    cast = lambda a: a.astype(out_dtype)
    return {
        "wq_t": cast(f32(params["wq"]).T * scale),   # (Din, Dout), scale folded in f32
        "wk_t": cast(params["wk"].T),
        "wv_t": cast(params["wv"].T),
        "b_qkv": cast(jnp.stack([f32(params["bq"]) * scale,
                                 f32(params["bk"]),
                                 f32(params["bv"])], axis=0)),
        "wo_t": cast(params["wo"].T),
        "bo": cast(params["bo"]),
    }


# --------------------------------------------------------------------------
# Full CustomAttention forward (Pallas kernels for all matmuls / softmax,
# plain jnp.reshape glue matching torch .view / .reshape semantics).
# --------------------------------------------------------------------------
def custom_attention_forward(x, prepped, num_heads):
    B, L, D = x.shape
    h = num_heads
    d = D // h
    dtype = prepped["wq_t"].dtype
    x2d = x.astype(dtype).reshape(B * L, D)

    # Fused Q/K/V projection (x read once), then the exact torch `.view(B,h,L,d)`
    Q2d, K2d, V2d = pallas_qkv_proj(x2d, prepped["wq_t"], prepped["wk_t"],
                                    prepped["wv_t"], prepped["b_qkv"])
    Q = Q2d.reshape(B, h, L, d)
    K = K2d.reshape(B, h, L, d)
    V = V2d.reshape(B, h, L, d)

    attn = pallas_flash_attention(Q, K, V)    # (B, h, L, d)
    attn2d = attn.reshape(B * L, D)           # torch .reshape(B, L, D), contiguous

    # TODO(synk): fuse out_proj into the attention finalize (needs h | TQ
    # in-kernel regrouping because of the torch .view head-split semantics) to
    # save one HBM round-trip of the attention output; and for head_dim < 128
    # restructure acc/output to a lane-dense (TQ, H*d) layout.
    out = pallas_linear(attn2d, prepped["wo_t"], prepped["bo"]).reshape(B, L, D)
    return out


# --------------------------------------------------------------------------
# Pure-JAX reference (same math) for correctness checks.
# --------------------------------------------------------------------------
def reference_forward(x, params, num_heads):
    B, L, D = x.shape
    h = num_heads
    d = D // h

    def lin(z, w, b):
        return z @ w.T + b

    Q = lin(x, params["wq"], params["bq"]).reshape(B, h, L, d)
    K = lin(x, params["wk"], params["bk"]).reshape(B, h, L, d)
    V = lin(x, params["wv"], params["bv"]).reshape(B, h, L, d)
    s = jnp.einsum("bhqd,bhkd->bhqk", Q, K) / math.sqrt(d)
    p = jax.nn.softmax(s, axis=-1)
    o = jnp.einsum("bhqk,bhkd->bhqd", p, V).reshape(B, L, D)
    return lin(o, params["wo"], params["bo"])


if __name__ == "__main__":
    # Small shapes consistent with the module
    B, L, D, H = 2, 8, 32, 4

    key = jax.random.PRNGKey(0)
    keys = jax.random.split(key, 9)
    init = lambda k, shape: (0.05 * jax.random.normal(k, shape)).astype(jnp.float32)

    params = {
        "wq": init(keys[0], (D, D)), "bq": init(keys[1], (D,)),
        "wk": init(keys[2], (D, D)), "bk": init(keys[3], (D,)),
        "wv": init(keys[4], (D, D)), "bv": init(keys[5], (D,)),
        "wo": init(keys[6], (D, D)), "bo": init(keys[7], (D,)),
    }
    x = jax.random.normal(keys[8], (B, L, D), dtype=jnp.float32)

    ref = reference_forward(x, params, H)

    # f32 compute path — tight check
    out_f32 = custom_attention_forward(x, prepare_params(params, H), H)
    out_f32 = jax.block_until_ready(out_f32)
    assert out_f32.shape == (B, L, D)
    assert jnp.allclose(out_f32, ref, atol=2e-3, rtol=2e-3), "f32 mismatch vs reference"

    # bf16 MXU fast path (v6e / v7x) — f32 accumulation, loose check
    out_bf16 = custom_attention_forward(x, prepare_params(params, H, jnp.bfloat16), H)
    out_bf16 = jax.block_until_ready(out_bf16)
    assert jnp.allclose(out_bf16.astype(jnp.float32), ref, atol=3e-2, rtol=3e-2), \
        "bf16 mismatch vs reference"

    print("KERNEL_OK")
</pallas_src>

<mosaic_0001>
module attributes {stable_mosaic.version = 11 : i64} {
  func.func @_qkv_proj_kernel(%arg0: i32, %arg1: i32, %arg2: memref<8x32xf32, #tpu.memory_space<vmem>>, %arg3: memref<32x32xf32, #tpu.memory_space<vmem>>, %arg4: memref<32x32xf32, #tpu.memory_space<vmem>>, %arg5: memref<32x32xf32, #tpu.memory_space<vmem>>, %arg6: memref<3x32xf32, #tpu.memory_space<vmem>>, %arg7: memref<8x32xf32, #tpu.memory_space<vmem>>, %arg8: memref<8x32xf32, #tpu.memory_space<vmem>>, %arg9: memref<8x32xf32, #tpu.memory_space<vmem>>) attributes {dimension_semantics = [#tpu.dimension_semantics<parallel>, #tpu.dimension_semantics<parallel>], iteration_bounds = array<i64: 1, 2>, scalar_prefetch = 0 : i64, scratch_operands = 0 : i64, tpu.core_type = #tpu.core_type<tc>, window_params = [{transform_indices = @transform_0, window_bounds = array<i64: 8, 32>}, {transform_indices = @transform_1, window_bounds = array<i64: 32, 32>}, {transform_indices = @transform_2, window_bounds = array<i64: 32, 32>}, {transform_indices = @transform_3, window_bounds = array<i64: 32, 32>}, {transform_indices = @transform_4, window_bounds = array<i64: 3, 32>}, {transform_indices = @transform_5, window_bounds = array<i64: 8, 32>}, {transform_indices = @transform_6, window_bounds = array<i64: 8, 32>}, {transform_indices = @transform_7, window_bounds = array<i64: 8, 32>}]} {
    %c0 = arith.constant 0 : index
    %c0_0 = arith.constant 0 : index
    %0 = vector.load %arg2[%c0, %c0_0] : memref<8x32xf32, #tpu.memory_space<vmem>>, vector<8x32xf32>
    %c0_1 = arith.constant 0 : index
    %c0_2 = arith.constant 0 : index
    %1 = vector.load %arg3[%c0_1, %c0_2] : memref<32x32xf32, #tpu.memory_space<vmem>>, vector<32x32xf32>
    %cst = arith.constant dense<0.000000e+00> : vector<8x32xf32>
    %2 = tpu.matmul %0, %1, %cst {dimension_numbers = #tpu.dot_dimension_numbers<[1], [0], [0], [1], [0, 0, 1, 1], [], []>} : vector<8x32xf32>, vector<32x32xf32>, vector<8x32xf32> -> vector<8x32xf32>
    %c0_3 = arith.constant 0 : index
    %c0_4 = arith.constant 0 : index
    %3 = vector.load %arg4[%c0_3, %c0_4] : memref<32x32xf32, #tpu.memory_space<vmem>>, vector<32x32xf32>
    %cst_5 = arith.constant dense<0.000000e+00> : vector<8x32xf32>
    %4 = tpu.matmul %0, %3, %cst_5 {dimension_numbers = #tpu.dot_dimension_numbers<[1], [0], [0], [1], [0, 0, 1, 1], [], []>} : vector<8x32xf32>, vector<32x32xf32>, vector<8x32xf32> -> vector<8x32xf32>
    %c0_6 = arith.constant 0 : index
    %c0_7 = arith.constant 0 : index
    %5 = vector.load %arg5[%c0_6, %c0_7] : memref<32x32xf32, #tpu.memory_space<vmem>>, vector<32x32xf32>
    %cst_8 = arith.constant dense<0.000000e+00> : vector<8x32xf32>
    %6 = tpu.matmul %0, %5, %cst_8 {dimension_numbers = #tpu.dot_dimension_numbers<[1], [0], [0], [1], [0, 0, 1, 1], [], []>} : vector<8x32xf32>, vector<32x32xf32>, vector<8x32xf32> -> vector<8x32xf32>
    %c0_9 = arith.constant 0 : index
    %c0_10 = arith.constant 0 : index
    %7 = vector.load %arg6[%c0_9, %c0_10] : memref<3x32xf32, #tpu.memory_space<vmem>>, vector<1x32xf32>
    %8 = vector.broadcast %7 : vector<1x32xf32> to vector<8x32xf32>
    %9 = arith.addf %2, %8 : vector<8x32xf32>
    %c0_11 = arith.constant 0 : index
    %c0_12 = arith.constant 0 : index
    %10 = vector.load %arg7[%c0_11, %c0_12] : memref<8x32xf32, #tpu.memory_space<vmem>>, vector<8x32xf32>
    tpu.vector_store %arg7[%c0_11, %c0_12], %9 {strides = array<i32>} : memref<8x32xf32, #tpu.memory_space<vmem>>, vector<8x32xf32>,
    %c1 = arith.constant 1 : index
    %c0_13 = arith.constant 0 : index
    %11 = vector.load %arg6[%c1, %c0_13] : memref<3x32xf32, #tpu.memory_space<vmem>>, vector<1x32xf32>
    %12 = vector.broadcast %11 : vector<1x32xf32> to vector<8x32xf32>
    %13 = arith.addf %4, %12 : vector<8x32xf32>
    %c0_14 = arith.constant 0 : index
    %c0_15 = arith.constant 0 : index
    %14 = vector.load %arg8[%c0_14, %c0_15] : memref<8x32xf32, #tpu.memory_space<vmem>>, vector<8x32xf32>
    tpu.vector_store %arg8[%c0_14, %c0_15], %13 {strides = array<i32>} : memref<8x32xf32, #tpu.memory_space<vmem>>, vector<8x32xf32>,
    %c2 = arith.constant 2 : index
    %c0_16 = arith.constant 0 : index
    %15 = vector.load %arg6[%c2, %c0_16] : memref<3x32xf32, #tpu.memory_space<vmem>>, vector<1x32xf32>
    %16 = vector.broadcast %15 : vector<1x32xf32> to vector<8x32xf32>
    %17 = arith.addf %6, %16 : vector<8x32xf32>
    %c0_17 = arith.constant 0 : index
    %c0_18 = arith.constant 0 : index
    %18 = vector.load %arg9[%c0_17, %c0_18] : memref<8x32xf32, #tpu.memory_space<vmem>>, vector<8x32xf32>
    tpu.vector_store %arg9[%c0_17, %c0_18], %17 {strides = array<i32>} : memref<8x32xf32, #tpu.memory_space<vmem>>, vector<8x32xf32>,
    return
  }
  func.func @transform_0(%arg0: i32, %arg1: i32) -> (i32, i32) {
    %c0_i32 = arith.constant 0 : i32
    %c0_i32_0 = arith.constant 0 : i32
    return %arg1, %c0_i32 : i32, i32
  }
  func.func @transform_1(%arg0: i32, %arg1: i32) -> (i32, i32) {
    %c0_i32 = arith.constant 0 : i32
    %c0_i32_0 = arith.constant 0 : i32
    return %c0_i32, %arg0 : i32, i32
  }
  func.func @transform_2(%arg0: i32, %arg1: i32) -> (i32, i32) {
    %c0_i32 = arith.constant 0 : i32
    %c0_i32_0 = arith.constant 0 : i32
    return %c0_i32, %arg0 : i32, i32
  }
  func.func @transform_3(%arg0: i32, %arg1: i32) -> (i32, i32) {
    %c0_i32 = arith.constant 0 : i32
    %c0_i32_0 = arith.constant 0 : i32
    return %c0_i32, %arg0 : i32, i32
  }
  func.func @transform_4(%arg0: i32, %arg1: i32) -> (i32, i32) {
    %c0_i32 = arith.constant 0 : i32
    %c0_i32_0 = arith.constant 0 : i32
    return %c0_i32, %arg0 : i32, i32
  }
  func.func @transform_5(%arg0: i32, %arg1: i32) -> (i32, i32) {
    %c0_i32 = arith.constant 0 : i32
    return %arg1, %arg0 : i32, i32
  }
  func.func @transform_6(%arg0: i32, %arg1: i32) -> (i32, i32) {
    %c0_i32 = arith.constant 0 : i32
    return %arg1, %arg0 : i32, i32
  }
  func.func @transform_7(%arg0: i32, %arg1: i32) -> (i32, i32) {
    %c0_i32 = arith.constant 0 : i32
    return %arg1, %arg0 : i32, i32
  }
}

</mosaic_0001>

<llo_original>
// kernel: tpu_custom_call.1
$region0: #{tpu_custom_call.1}
  #allocation0 [shape = 'u32[]', space=smem, size = 0x4, offset = 0x4, fixed_abs, tag = 'smem constant byte address 0x4 - core index']
  #allocation1 [shape = 'u32[144,128]{1,0:T(1,128)}', space=vmem, size = 0x12000, scoped, tag = 'internal scratch']
  %s0 = inlined_call_operand.hbm [shape: f32[16,32], index: 0, kind: input, shape index: {}]
  %s1 = inlined_call_operand.hbm [shape: f32[32,32], index: 1, kind: input, shape index: {}]
  %s2 = inlined_call_operand.hbm [shape: f32[32,32], index: 2, kind: input, shape index: {}]
  %s3 = inlined_call_operand.hbm [shape: f32[32,32], index: 3, kind: input, shape index: {}]
  %s4 = inlined_call_operand.vmem [shape: f32[3,32], index: 4, kind: input, shape index: {}]
  %s5 = inlined_call_operand.hbm [shape: f32[16,32], index: 5, kind: output, shape index: {0}]
  %s6 = inlined_call_operand.hbm [shape: f32[16,32], index: 6, kind: output, shape index: {1}]
  %s7 = inlined_call_operand.hbm [shape: f32[16,32], index: 7, kind: output, shape index: {2}]
  %8 = xla_tuple %s5, %s6, %s7
  %s9 = sld [smem:[#allocation0]]
  $region85: #{tpu_custom_call.1} parent=0
    _
  %s11 = ssub.s32 1, %s9
  %s12 = scalar_select 0, %s11, %s9
  $region1: #{tpu_custom_call.1} parent=0
    #allocation2 [shape = 'u8[8192]{0}', space=vmem, size = 0x2000, scoped, tag = 'input window, operand 0']
    #allocation3 [shape = 's32[2]{0}', space=sflag, size = 0x8, scoped, tag = 'scoped memory for tpu_custom_call.1']
    #allocation4 [shape = 's32[2]{0}', space=sflag, size = 0x8, scoped, tag = 'scoped memory for tpu_custom_call.1']
    #allocation5 [shape = 'u8[16384]{0}', space=vmem, size = 0x4000, scoped, tag = 'input window, operand 1, single buffered']
    #allocation6 [shape = 's32[1]{0}', space=sflag, size = 0x4, scoped, tag = 'scoped memory for tpu_custom_call.1']
    #allocation7 [shape = 'u8[16384]{0}', space=vmem, size = 0x4000, scoped, tag = 'input window, operand 2, single buffered']
    #allocation8 [shape = 'u8[16384]{0}', space=vmem, size = 0x4000, scoped, tag = 'input window, operand 3, single buffered']
    #allocation9 [shape = 's32[1]{0}', space=sflag, size = 0x4, scoped, tag = 'scoped memory for tpu_custom_call.1']
    #allocation10 [shape = 'u8[8192]{0}', space=vmem, size = 0x2000, scoped, tag = 'output window, operand 0']
    #allocation11 [shape = 'u8[8192]{0}', space=vmem, size = 0x2000, scoped, tag = 'output window, operand 1']
    #allocation12 [shape = 's32[2]{0}', space=sflag, size = 0x8, scoped, tag = 'scoped memory for tpu_custom_call.1']
    #allocation13 [shape = 'u8[8192]{0}', space=vmem, size = 0x2000, scoped, tag = 'output window, operand 2']
    %13 = vsyncpa [#allocation3], 0
    %s14 = scalar_lea.sflag [#allocation3], 1
    %15 = vsyncpa %s14, 0
    %16 = vsyncpa [#allocation6], 0
    %17 = vsyncpa [#allocation9], 0
    %18 = vsyncpa [#allocation4], 0
    %s19 = scalar_lea.sflag [#allocation4], 1
    %20 = vsyncpa %s19, 0
    %21 = vsyncpa [#allocation12], 0
    %s22 = scalar_lea.sflag [#allocation12], 1
    %23 = vsyncpa %s22, 0
    loop: start=0, step=1, limit=4
    $region2: #{tpu_custom_call.1} parent=1 // loop_pre_header
      _
    $region3: #{tpu_custom_call.1} parent=1 // loop_header
      %s25 = sphi 0, %s29
      %p26 = scmp.ge.s32.totalorder %s25, 4
      %s32 = sphi 0, %s44
      %s33 = sphi 0, %s40
      %s34 = sphi 0, %s32
      %s35 = sphi 0, %s33
      %s36 = sphi 0, %s34
      %s37 = sphi 0, %s35
      %s47 = sphi 0, %s49
      %s50 = sphi 0, %s47
      %s51 = sphi 0, %s50
      %s67 = sphi 0, %s51
      %s73 = sphi 0, %s75
      %s76 = sphi 0, %s73
      %s77 = sphi 0, %s76
      %s93 = sphi 0, %s77
      %s99 = sphi 0, %s101
      %s102 = sphi 0, %s99
      %s103 = sphi 0, %s102
      %s119 = sphi 0, %s103
      %s125 = sphi 0, %s127
      %s128 = sphi 0, %s125
      %s129 = sphi 0, %s128
      %s145 = sphi 0, %s129
      %s151 = sphi 0, %s153
      %s154 = sphi 0, %s151
      %s155 = sphi 0, %s154
      %s171 = sphi 0, %s155
      %s179 = sphi 0, %s181
      %s182 = sphi 0, %s179
      %s183 = sphi 0, %s182
      %s199 = sphi 0, %s183
      %s207 = sphi 0, %s209
      %s210 = sphi 0, %s207
      %s211 = sphi 0, %s210
      %s227 = sphi 0, %s211
      %s235 = sphi 0, %s237
      %s238 = sphi 0, %s235
      %s239 = sphi 0, %s238
      %s255 = sphi 0, %s239
    $region4: #{tpu_custom_call.1} parent=1 // loop_header_branch
      %28 = sbr.rel (%p26) target = $region8
    $region5: #{tpu_custom_call.1} parent=1 // loop_body
      %s30 = ssub.s32 %s25, 1
      %s31 = ssub.s32 %s25, 2
      %s38 = sadd.s32 1, %s33
      %p39 = scmp.ge.s32.totalorder %s38, 2
      %s40 = scalar_select %p39, 0, %s38
      %s41 = sadd.s32 1, %s32
      %s42 = scalar_select %p39, %s41, %s32
      %p43 = scmp.ge.s32.totalorder %s42, 1
      %s44 = scalar_select %p43, 0, %s42
      %s45 = ssub.s32 %s33, %s40
      %p46 = scmp.eq.s32.totalorder %s45, 0
      %s48 = sadd.s32 %s47, 1
      %s49 = scalar_select %p46, %s47, %s48
      %p52 = pneg %p46
      %p53 = scmp.eq.s32.totalorder %s25, 1
      %p54 = por %p52, %p53
      %p55 = scmp.ne.s32.totalorder %s47, %s50
      %p56 = scmp.eq.s32.totalorder %s25, 0
      %p57 = por %p55, %p56
      %p58 = scmp.ne.s32.totalorder %s47, %s50
      %p59 = scmp.eq.s32.totalorder %s30, 1
      %p60 = por %p58, %p59
      %p61 = scmp.ne.s32.totalorder %s50, %s51
      %p62 = scmp.eq.s32.totalorder %s30, 0
      %p63 = por %p61, %p62
      %p64 = scmp.ne.s32.totalorder %s50, %s51
      %p65 = scmp.eq.s32.totalorder %s31, 1
      %p66 = por %p64, %p65
      %p68 = scmp.ne.s32.totalorder %s51, %s67
      %p69 = scmp.eq.s32.totalorder %s31, 0
      %p70 = por %p68, %p69
      %s71 = ssub.s32 %s32, %s44
      %p72 = scmp.eq.s32.totalorder %s71, 0
      %s74 = sadd.s32 %s73, 1
      %s75 = scalar_select %p72, %s73, %s74
      %p78 = pneg %p72
      %p79 = scmp.eq.s32.totalorder %s25, 1
      %p80 = por %p78, %p79
      %p81 = scmp.ne.s32.totalorder %s73, %s76
      %p82 = scmp.eq.s32.totalorder %s25, 0
      %p83 = por %p81, %p82
      %p84 = scmp.ne.s32.totalorder %s73, %s76
      %p85 = scmp.eq.s32.totalorder %s30, 1
      %p86 = por %p84, %p85
      %p87 = scmp.ne.s32.totalorder %s76, %s77
      %p88 = scmp.eq.s32.totalorder %s30, 0
      %p89 = por %p87, %p88
      %p90 = scmp.ne.s32.totalorder %s76, %s77
      %p91 = scmp.eq.s32.totalorder %s31, 1
      %p92 = por %p90, %p91
      %p94 = scmp.ne.s32.totalorder %s77, %s93
      %p95 = scmp.eq.s32.totalorder %s31, 0
      %p96 = por %p94, %p95
      %s97 = ssub.s32 %s32, %s44
      %p98 = scmp.eq.s32.totalorder %s97, 0
      %s100 = sadd.s32 %s99, 1
      %s101 = scalar_select %p98, %s99, %s100
      %p104 = pneg %p98
      %p105 = scmp.eq.s32.totalorder %s25, 1
      %p106 = por %p104, %p105
      %p107 = scmp.ne.s32.totalorder %s99, %s102
      %p108 = scmp.eq.s32.totalorder %s25, 0
      %p109 = por %p107, %p108
      %p110 = scmp.ne.s32.totalorder %s99, %s102
      %p111 = scmp.eq.s32.totalorder %s30, 1
      %p112 = por %p110, %p111
      %p113 = scmp.ne.s32.totalorder %s102, %s103
      %p114 = scmp.eq.s32.totalorder %s30, 0
      %p115 = por %p113, %p114
      %p116 = scmp.ne.s32.totalorder %s102, %s103
      %p117 = scmp.eq.s32.totalorder %s31, 1
      %p118 = por %p116, %p117
      %p120 = scmp.ne.s32.totalorder %s103, %s119
      %p121 = scmp.eq.s32.totalorder %s31, 0
      %p122 = por %p120, %p121
      %s123 = ssub.s32 %s32, %s44
      %p124 = scmp.eq.s32.totalorder %s123, 0
      %s126 = sadd.s32 %s125, 1
      %s127 = scalar_select %p124, %s125, %s126
      %p130 = pneg %p124
      %p131 = scmp.eq.s32.totalorder %s25, 1
      %p132 = por %p130, %p131
      %p133 = scmp.ne.s32.totalorder %s125, %s128
      %p134 = scmp.eq.s32.totalorder %s25, 0
      %p135 = por %p133, %p134
      %p136 = scmp.ne.s32.totalorder %s125, %s128
      %p137 = scmp.eq.s32.totalorder %s30, 1
      %p138 = por %p136, %p137
      %p139 = scmp.ne.s32.totalorder %s128, %s129
      %p140 = scmp.eq.s32.totalorder %s30, 0
      %p141 = por %p139, %p140
      %p142 = scmp.ne.s32.totalorder %s128, %s129
      %p143 = scmp.eq.s32.totalorder %s31, 1
      %p144 = por %p142, %p143
      %p146 = scmp.ne.s32.totalorder %s129, %s145
      %p147 = scmp.eq.s32.totalorder %s31, 0
      %p148 = por %p146, %p147
      %s149 = ssub.s32 %s32, %s44
      %p150 = scmp.eq.s32.totalorder %s149, 0
      %s152 = sadd.s32 %s151, 1
      %s153 = scalar_select %p150, %s151, %s152
      %p156 = pneg %p150
      %p157 = scmp.eq.s32.totalorder %s25, 1
      %p158 = por %p156, %p157
      %p159 = scmp.ne.s32.totalorder %s151, %s154
      %p160 = scmp.eq.s32.totalorder %s25, 0
      %p161 = por %p159, %p160
      %p162 = scmp.ne.s32.totalorder %s151, %s154
      %p163 = scmp.eq.s32.totalorder %s30, 1
      %p164 = por %p162, %p163
      %p165 = scmp.ne.s32.totalorder %s154, %s155
      %p166 = scmp.eq.s32.totalorder %s30, 0
      %p167 = por %p165, %p166
      %p168 = scmp.ne.s32.totalorder %s154, %s155
      %p169 = scmp.eq.s32.totalorder %s31, 1
      %p170 = por %p168, %p169
      %p172 = scmp.ne.s32.totalorder %s155, %s171
      %p173 = scmp.eq.s32.totalorder %s31, 0
      %p174 = por %p172, %p173
      %s175 = ssub.s32 %s33, %s40
      %s176 = ssub.s32 %s32, %s44
      %s177 = sor.u32 %s175, %s176
      %p178 = scmp.eq.s32.totalorder %s177, 0
      %s180 = sadd.s32 %s179, 1
      %s181 = scalar_select %p178, %s179, %s180
      %p184 = pneg %p178
      %p185 = scmp.eq.s32.totalorder %s25, 1
      %p186 = por %p184, %p185
      %p187 = scmp.ne.s32.totalorder %s179, %s182
      %p188 = scmp.eq.s32.totalorder %s25, 0
      %p189 = por %p187, %p188
      %p190 = scmp.ne.s32.totalorder %s179, %s182
      %p191 = scmp.eq.s32.totalorder %s30, 1
      %p192 = por %p190, %p191
      %p193 = scmp.ne.s32.totalorder %s182, %s183
      %p194 = scmp.eq.s32.totalorder %s30, 0
      %p195 = por %p193, %p194
      %p196 = scmp.ne.s32.totalorder %s182, %s183
      %p197 = scmp.eq.s32.totalorder %s31, 1
      %p198 = por %p196, %p197
      %p200 = scmp.ne.s32.totalorder %s183, %s199
      %p201 = scmp.eq.s32.totalorder %s31, 0
      %p202 = por %p200, %p201
      %s203 = ssub.s32 %s33, %s40
      %s204 = ssub.s32 %s32, %s44
      %s205 = sor.u32 %s203, %s204
      %p206 = scmp.eq.s32.totalorder %s205, 0
      %s208 = sadd.s32 %s207, 1
      %s209 = scalar_select %p206, %s207, %s208
      %p212 = pneg %p206
      %p213 = scmp.eq.s32.totalorder %s25, 1
      %p214 = por %p212, %p213
      %p215 = scmp.ne.s32.totalorder %s207, %s210
      %p216 = scmp.eq.s32.totalorder %s25, 0
      %p217 = por %p215, %p216
      %p218 = scmp.ne.s32.totalorder %s207, %s210
      %p219 = scmp.eq.s32.totalorder %s30, 1
      %p220 = por %p218, %p219
      %p221 = scmp.ne.s32.totalorder %s210, %s211
      %p222 = scmp.eq.s32.totalorder %s30, 0
      %p223 = por %p221, %p222
      %p224 = scmp.ne.s32.totalorder %s210, %s211
      %p225 = scmp.eq.s32.totalorder %s31, 1
      %p226 = por %p224, %p225
      %p228 = scmp.ne.s32.totalorder %s211, %s227
      %p229 = scmp.eq.s32.totalorder %s31, 0
      %p230 = por %p228, %p229
      %s231 = ssub.s32 %s33, %s40
      %s232 = ssub.s32 %s32, %s44
      %s233 = sor.u32 %s231, %s232
      %p234 = scmp.eq.s32.totalorder %s233, 0
      %s236 = sadd.s32 %s235, 1
      %s237 = scalar_select %p234, %s235, %s236
      %p240 = pneg %p234
      %p241 = scmp.eq.s32.totalorder %s25, 1
      %p242 = por %p240, %p241
      %p243 = scmp.ne.s32.totalorder %s235, %s238
      %p244 = scmp.eq.s32.totalorder %s25, 0
      %p245 = por %p243, %p244
      %p246 = scmp.ne.s32.totalorder %s235, %s238
      %p247 = scmp.eq.s32.totalorder %s30, 1
      %p248 = por %p246, %p247
      %p249 = scmp.ne.s32.totalorder %s238, %s239
      %p250 = scmp.eq.s32.totalorder %s30, 0
      %p251 = por %p249, %p250
      %p252 = scmp.ne.s32.totalorder %s238, %s239
      %p253 = scmp.eq.s32.totalorder %s31, 1
      %p254 = por %p252, %p253
      %p256 = scmp.ne.s32.totalorder %s239, %s255
      %p257 = scmp.eq.s32.totalorder %s31, 0
      %p258 = por %p256, %p257
      %p259 = scmp.le.s32.totalorder 1, %s25
      %p260 = scmp.lt.s32.totalorder %s25, 3
      %p261 = pnand %p259, %p260
      %p262 = pneg %p261
      // Predicated region
      $region9: #{tpu_custom_call.1} parent=5 // pred_check
        _
      $region10: #{tpu_custom_call.1} parent=5 // pred_check_branch
        %264 = sbr.rel (%p261) target = $region12
      $region11: #{tpu_custom_call.1} parent=5 // pred_region
        %s265 = ssub.s32 %s25, 1
        // Predicated region
        $region13: #{tpu_custom_call.1} parent=11 // pred_check
          %p266 = pneg %p89
        $region14: #{tpu_custom_call.1} parent=11 // pred_check_branch
          %268 = sbr.rel (%p266) target = $region16
        $region15: #{tpu_custom_call.1} parent=11 // pred_region
          %s270 = ssub.s32 512, 512
          %271 = vsyncadd [#allocation6], %s270
          %s272 = smul.addr %s34, 128
          %s273 = scalar_lea.hbm %s1, %s272
          %s274 = sshll.u32 [#allocation5], 4
          %s275 = int_to_ptr.vmem [resolvable:$true] %s274
          %280 = dma.hbm_to_vmem [thread:$0]  %s273, 512, %s275, [#allocation6], 128, 128, 8
        $region16: #{tpu_custom_call.1} parent=11 // pred_fallthru
          _
        // Predicated region
        $region17: #{tpu_custom_call.1} parent=11 // pred_check
          %p281 = pneg %p115
        $region18: #{tpu_custom_call.1} parent=11 // pred_check_branch
          %283 = sbr.rel (%p281) target = $region20
        $region19: #{tpu_custom_call.1} parent=11 // pred_region
          %s285 = ssub.s32 512, 512
          %286 = vsyncadd [#allocation6], %s285
          %s287 = smul.addr %s34, 128
          %s288 = scalar_lea.hbm %s2, %s287
          %s289 = sshll.u32 [#allocation7], 4
          %s290 = int_to_ptr.vmem [resolvable:$true] %s289
          %295 = dma.hbm_to_vmem [thread:$0]  %s288, 512, %s290, [#allocation6], 128, 128, 8
        $region20: #{tpu_custom_call.1} parent=11 // pred_fallthru
          _
        // Predicated region
        $region21: #{tpu_custom_call.1} parent=11 // pred_check
          %p296 = pneg %p141
        $region22: #{tpu_custom_call.1} parent=11 // pred_check_branch
          %298 = sbr.rel (%p296) target = $region24
        $region23: #{tpu_custom_call.1} parent=11 // pred_region
          %s300 = ssub.s32 512, 512
          %301 = vsyncadd [#allocation9], %s300
          %s302 = smul.addr %s34, 128
          %s303 = scalar_lea.hbm %s3, %s302
          %s304 = sshll.u32 [#allocation8], 4
          %s305 = int_to_ptr.vmem [resolvable:$true] %s304
          %310 = dma.hbm_to_vmem [thread:$0]  %s303, 512, %s305, [#allocation9], 128, 128, 8
        $region24: #{tpu_custom_call.1} parent=11 // pred_fallthru
          _
        // Predicated region
        $region25: #{tpu_custom_call.1} parent=11 // pred_check
          %p311 = pneg %p167
        $region26: #{tpu_custom_call.1} parent=11 // pred_check_branch
          %313 = sbr.rel (%p311) target = $region28
        $region27: #{tpu_custom_call.1} parent=11 // pred_region
          %p314 = scmp.lt.s32.totalorder %s34, 0
          %s315 = scalar_select %p314, %s34, 0
          %s316 = smul.addr %s315, 4
          %s317 = scalar_lea.vmem %s4, %s316
        $region28: #{tpu_custom_call.1} parent=11 // pred_fallthru
          _
      $region12: #{tpu_custom_call.1} parent=5 // pred_fallthru
        _
      %p318 = scmp.lt.s32.totalorder %s25, 2
      // Predicated region
      $region29: #{tpu_custom_call.1} parent=5 // pred_check
        %p319 = pneg %p318
      $region30: #{tpu_custom_call.1} parent=5 // pred_check_branch
        %321 = sbr.rel (%p319) target = $region32
      $region31: #{tpu_custom_call.1} parent=5 // pred_region
        // Predicated region
        $region33: #{tpu_custom_call.1} parent=31 // pred_check
          %p322 = pneg %p57
        $region34: #{tpu_custom_call.1} parent=31 // pred_check_branch
          %324 = sbr.rel (%p322) target = $region36
        $region35: #{tpu_custom_call.1} parent=31 // pred_region
          %s325 = sand.u32 %s47, 1
          %s326 = scalar_lea.sflag [#allocation3], %s325
          %s327 = sand.u32 %s47, 1
          %s328 = smul.addr %s327, 8
          %s329 = scalar_lea.vmem [#allocation2], %s328
          %s331 = ssub.s32 128, 128
          %332 = vsyncadd %s326, %s331
          %s333 = smul.addr %s33, 128
          %s334 = scalar_lea.hbm %s0, %s333
          %s336 = sshll.u32 %s329, 4
          %s337 = int_to_ptr.vmem [resolvable:$true] %s336
          %339 = dma.hbm_to_vmem [thread:$0]  %s334, 128, %s337, %s326
        $region36: #{tpu_custom_call.1} parent=31 // pred_fallthru
          _
      $region32: #{tpu_custom_call.1} parent=5 // pred_fallthru
        _
      %p340 = scmp.le.s32.totalorder 1, %s25
      %p341 = scmp.lt.s32.totalorder %s25, 3
      %p342 = pnand %p340, %p341
      %p343 = pneg %p342
      // Predicated region
      $region37: #{tpu_custom_call.1} parent=5 // pred_check
        _
      $region38: #{tpu_custom_call.1} parent=5 // pred_check_branch
        %345 = sbr.rel (%p342) target = $region40
      $region39: #{tpu_custom_call.1} parent=5 // pred_region
        %s346 = ssub.s32 %s25, 1
        %s347 = sand.u32 %s50, 1
        %s348 = scalar_lea.sflag [#allocation3], %s347
        %s349 = sand.u32 %s50, 1
        %s350 = smul.addr %s349, 8
        %s351 = scalar_lea.vmem [#allocation2], %s350
        // Predicated region
        $region41: #{tpu_custom_call.1} parent=39 // pred_check
          %p352 = pneg %p63
        $region42: #{tpu_custom_call.1} parent=39 // pred_check_branch
          %354 = sbr.rel (%p352) target = $region44
        $region43: #{tpu_custom_call.1} parent=39 // pred_region
          %355 = dma.done %s348, 128
        $region44: #{tpu_custom_call.1} parent=39 // pred_fallthru
          _
        // Predicated region
        $region45: #{tpu_custom_call.1} parent=39 // pred_check
          %p356 = pneg %p89
        $region46: #{tpu_custom_call.1} parent=39 // pred_check_branch
          %358 = sbr.rel (%p356) target = $region48
        $region47: #{tpu_custom_call.1} parent=39 // pred_region
          %359 = dma.done [#allocation6], 512
        $region48: #{tpu_custom_call.1} parent=39 // pred_fallthru
          _
        // Predicated region
        $region49: #{tpu_custom_call.1} parent=39 // pred_check
          %p360 = pneg %p115
        $region50: #{tpu_custom_call.1} parent=39 // pred_check_branch
          %362 = sbr.rel (%p360) target = $region52
        $region51: #{tpu_custom_call.1} parent=39 // pred_region
          %363 = dma.done [#allocation6], 512
        $region52: #{tpu_custom_call.1} parent=39 // pred_fallthru
          _
        // Predicated region
        $region53: #{tpu_custom_call.1} parent=39 // pred_check
          %p364 = pneg %p141
        $region54: #{tpu_custom_call.1} parent=39 // pred_check_branch
          %366 = sbr.rel (%p364) target = $region56
        $region55: #{tpu_custom_call.1} parent=39 // pred_region
          %367 = dma.done [#allocation9], 512
        $region56: #{tpu_custom_call.1} parent=39 // pred_fallthru
          _
        %s368 = sand.u32 %s50, 1
        %s369 = scalar_lea.sflag [#allocation3], %s368
        %s370 = sand.u32 %s50, 1
        %s371 = smul.addr %s370, 8
        %s372 = scalar_lea.vmem [#allocation2], %s371
        %p373 = pneg %p63
        %p374 = pneg %p60
        %p375 = pneg %p89
        %p376 = pneg %p86
        %p377 = pneg %p115
        %p378 = pneg %p112
        %p379 = pneg %p141
        %p380 = pneg %p138
        %p381 = scmp.lt.s32.totalorder %s34, 0
        %s382 = scalar_select %p381, %s34, 0
        %s383 = smul.addr %s382, 4
        %s384 = scalar_lea.vmem %s4, %s383
        %p385 = pneg %p167
        %p386 = pneg %p164
        %p387 = pneg %p195
        %p388 = pneg %p192
        %s389 = sand.u32 %s182, 1
        %s390 = scalar_lea.sflag [#allocation4], %s389
        %s391 = sand.u32 %s182, 1
        %s392 = smul.addr %s391, 8
        %s393 = scalar_lea.vmem [#allocation10], %s392
        %p394 = pneg %p223
        %p395 = pneg %p220
        %s396 = sand.u32 %s30, 1
        %s397 = scalar_lea.sflag [#allocation12], %s396
        %s398 = sand.u32 %s210, 1
        %s399 = smul.addr %s398, 8
        %s400 = scalar_lea.vmem [#allocation11], %s399
        %p401 = pneg %p251
        %p402 = pneg %p248
        %s403 = sand.u32 %s30, 1
        %s404 = scalar_lea.sflag [#allocation12], %s403
        %s405 = sand.u32 %s238, 1
        %s406 = smul.addr %s405, 8
        %s407 = scalar_lea.vmem [#allocation13], %s406
        %p408 = scmp.lt.s32.totalorder %s34, 0
        %s409 = scalar_select %p408, %s34, 0
        %s410 = smul.addr %s409, 4
        %s411 = scalar_lea.vmem %s4, %s410
        %v412 = vld [vmem:[%s351] sm:$0xff]
        %v413 = vld [vmem:[#allocation5] sm:$0xff]
        %v414 = vld [vmem:[#allocation5 + $0x8] sm:$0xff]
        %v415 = vld [vmem:[#allocation5 + $0x10] sm:$0xff]
        %v416 = vld [vmem:[#allocation5 + $0x18] sm:$0xff]
        %v417 = vld [vmem:[#allocation7] sm:$0xff]
        %v418 = vld [vmem:[#allocation7 + $0x8] sm:$0xff]
        %v419 = vld [vmem:[#allocation7 + $0x10] sm:$0xff]
        %v420 = vld [vmem:[#allocation7 + $0x18] sm:$0xff]
        %v421 = vld [vmem:[#allocation8] sm:$0xff]
        %v422 = vld [vmem:[#allocation8 + $0x8] sm:$0xff]
        %v423 = vld [vmem:[#allocation8 + $0x10] sm:$0xff]
        %v424 = vld [vmem:[#allocation8 + $0x18] sm:$0xff]
        %v425 = vld [vmem:[%s411] sm:$0x1]
        %v426 = vlaneseq
        %v427 = vshrl.u32 %v426, 7
        %v428 = vsub.s32 0, %v427
        %v429 = vrot.slane %v425, %v428
        %vm430 = vcmask 261120
        %v432 = vsel %vm430, %v412, 0
        %434 = vmatprep.subr.mxu0 0.0
        %435 = vmatpush1.msra.mxu0 0.0
        %436 = vmatprep.subr.mxu0 0.0
        %437 = vmatpush1.msra.mxu0 0.0
        %438 = vmatprep.subr.mxu0 0.0
        %439 = vmatpush1.msra.mxu0 0.0
        %440 = vmatprep.subr.mxu0 0.0
        %441 = vmatpush1.msra.mxu0 0.0
        %442 = vmatprep.subr.mxu0 0.0
        %443 = vmatpush1.msra.mxu0 0.0
        %444 = vmatprep.subr.mxu0 0.0
        %445 = vmatpush1.msra.mxu0 0.0
        %446 = vmatprep.subr.mxu0 0.0
        %447 = vmatpush1.msra.mxu0 0.0
        %448 = vmatprep.subr.mxu0 0.0
        %449 = vmatpush1.msra.mxu0 0.0
        %450 = vmatprep.subr.mxu0 0.0
        %451 = vmatpush1.msra.mxu0 0.0
        %452 = vmatprep.subr.mxu0 0.0
        %453 = vmatpush1.msra.mxu0 0.0
        %454 = vmatprep.subr.mxu0 0.0
        %455 = vmatpush1.msra.mxu0 0.0
        %456 = vmatprep.subr.mxu0 0.0
        %457 = vmatpush1.msra.mxu0 0.0
        %458 = vmatprep.subr.mxu0 0.0
        %459 = vmatpush1.msra.mxu0 %v416
        %460 = vmatprep.subr.mxu0 0.0
        %461 = vmatpush1.msra.mxu0 %v415
        %462 = vmatprep.subr.mxu0 0.0
        %463 = vmatpush1.msra.mxu0 %v414
        %464 = vmatprep.subr.mxu0 0.0
        %465 = vmatpush1.msra.mxu0 %v413
        %466 = vmatprep.subr.mxu0 0.0
        %467 = vmatpush2.msra.mxu0 0.0
        %468 = vmatprep.subr.mxu0 0.0
        %469 = vmatpush2.msra.mxu0 0.0
        %470 = vmatprep.subr.mxu0 0.0
        %471 = vmatpush2.msra.mxu0 0.0
        %472 = vmatprep.subr.mxu0 0.0
        %473 = vmatpush2.msra.mxu0 0.0
        %474 = vmatprep.subr.mxu0 0.0
        %475 = vmatpush2.msra.mxu0 0.0
        %476 = vmatprep.subr.mxu0 0.0
        %477 = vmatpush2.msra.mxu0 0.0
        %478 = vmatprep.subr.mxu0 0.0
        %479 = vmatpush2.msra.mxu0 0.0
        %480 = vmatprep.subr.mxu0 0.0
        %481 = vmatpush2.msra.mxu0 0.0
        %482 = vmatprep.subr.mxu0 0.0
        %483 = vmatpush2.msra.mxu0 0.0
        %484 = vmatprep.subr.mxu0 0.0
        %485 = vmatpush2.msra.mxu0 0.0
        %486 = vmatprep.subr.mxu0 0.0
        %487 = vmatpush2.msra.mxu0 0.0
        %488 = vmatprep.subr.mxu0 0.0
        %489 = vmatpush2.msra.mxu0 0.0
        %490 = vmatprep.subr.mxu0 0.0
        %491 = vmatpush2.msra.mxu0 0.0
        %492 = vmatprep.subr.mxu0 0.0
        %493 = vmatpush2.msra.mxu0 0.0
        %494 = vmatprep.subr.mxu0 0.0
        %495 = vmatpush2.msra.mxu0 0.0
        %496 = vmatprep.subr.mxu0 0.0
        %497 = vmatpush2.msra.mxu0 0.0
        %498 = vmatprep.mubr.f32.mxu0 0.0
        %499 = vmatmul.mubr.f32.gmra.mxu0 %v432
        %v500 = vpop.f32.mrf.mxu0
        %v501 = vadd.f32 %v429, %v500
        %v502 = vpop.f32.mrf.mxu0
        %503 = vdwg.mxu0
        %504 = vst.msk [vmem:[%s393] sm:$0xff] %vm430, %v501
        %v505 = vld [vmem:[%s411 + $0x1] sm:$0x1]
        %v506 = vlaneseq
        %v507 = vshrl.u32 %v506, 7
        %v508 = vsub.s32 0, %v507
        %v509 = vrot.slane %v505, %v508
        %510 = vmatprep.subr.mxu0 0.0
        %511 = vmatpush1.msra.mxu0 0.0
        %512 = vmatprep.subr.mxu0 0.0
        %513 = vmatpush1.msra.mxu0 0.0
        %514 = vmatprep.subr.mxu0 0.0
        %515 = vmatpush1.msra.mxu0 0.0
        %516 = vmatprep.subr.mxu0 0.0
        %517 = vmatpush1.msra.mxu0 0.0
        %518 = vmatprep.subr.mxu0 0.0
        %519 = vmatpush1.msra.mxu0 0.0
        %520 = vmatprep.subr.mxu0 0.0
        %521 = vmatpush1.msra.mxu0 0.0
        %522 = vmatprep.subr.mxu0 0.0
        %523 = vmatpush1.msra.mxu0 0.0
        %524 = vmatprep.subr.mxu0 0.0
        %525 = vmatpush1.msra.mxu0 0.0
        %526 = vmatprep.subr.mxu0 0.0
        %527 = vmatpush1.msra.mxu0 0.0
        %528 = vmatprep.subr.mxu0 0.0
        %529 = vmatpush1.msra.mxu0 0.0
        %530 = vmatprep.subr.mxu0 0.0
        %531 = vmatpush1.msra.mxu0 0.0
        %532 = vmatprep.subr.mxu0 0.0
        %533 = vmatpush1.msra.mxu0 0.0
        %534 = vmatprep.subr.mxu0 0.0
        %535 = vmatpush1.msra.mxu0 %v420
        %536 = vmatprep.subr.mxu0 0.0
        %537 = vmatpush1.msra.mxu0 %v419
        %538 = vmatprep.subr.mxu0 0.0
        %539 = vmatpush1.msra.mxu0 %v418
        %540 = vmatprep.subr.mxu0 0.0
        %541 = vmatpush1.msra.mxu0 %v417
        %542 = vmatprep.subr.mxu0 0.0
        %543 = vmatpush2.msra.mxu0 0.0
        %544 = vmatprep.subr.mxu0 0.0
        %545 = vmatpush2.msra.mxu0 0.0
        %546 = vmatprep.subr.mxu0 0.0
        %547 = vmatpush2.msra.mxu0 0.0
        %548 = vmatprep.subr.mxu0 0.0
        %549 = vmatpush2.msra.mxu0 0.0
        %550 = vmatprep.subr.mxu0 0.0
        %551 = vmatpush2.msra.mxu0 0.0
        %552 = vmatprep.subr.mxu0 0.0
        %553 = vmatpush2.msra.mxu0 0.0
        %554 = vmatprep.subr.mxu0 0.0
        %555 = vmatpush2.msra.mxu0 0.0
        %556 = vmatprep.subr.mxu0 0.0
        %557 = vmatpush2.msra.mxu0 0.0
        %558 = vmatprep.subr.mxu0 0.0
        %559 = vmatpush2.msra.mxu0 0.0
        %560 = vmatprep.subr.mxu0 0.0
        %561 = vmatpush2.msra.mxu0 0.0
        %562 = vmatprep.subr.mxu0 0.0
        %563 = vmatpush2.msra.mxu0 0.0
        %564 = vmatprep.subr.mxu0 0.0
        %565 = vmatpush2.msra.mxu0 0.0
        %566 = vmatprep.subr.mxu0 0.0
        %567 = vmatpush2.msra.mxu0 0.0
        %568 = vmatprep.subr.mxu0 0.0
        %569 = vmatpush2.msra.mxu0 0.0
        %570 = vmatprep.subr.mxu0 0.0
        %571 = vmatpush2.msra.mxu0 0.0
        %572 = vmatprep.subr.mxu0 0.0
        %573 = vmatpush2.msra.mxu0 0.0
        %574 = vmatprep.mubr.f32.mxu0 0.0
        %575 = vmatmul.mubr.f32.gmra.mxu0 %v432
        %v576 = vpop.f32.mrf.mxu0
        %v577 = vadd.f32 %v509, %v576
        %v578 = vpop.f32.mrf.mxu0
        %579 = vdwg.mxu0
        %580 = vst.msk [vmem:[%s400] sm:$0xff] %vm430, %v577
        %v581 = vld [vmem:[%s411 + $0x2] sm:$0x1]
        %v582 = vlaneseq
        %v583 = vshrl.u32 %v582, 7
        %v584 = vsub.s32 0, %v583
        %v585 = vrot.slane %v581, %v584
        %586 = vmatprep.subr.mxu0 0.0
        %587 = vmatpush1.msra.mxu0 0.0
        %588 = vmatprep.subr.mxu0 0.0
        %589 = vmatpush1.msra.mxu0 0.0
        %590 = vmatprep.subr.mxu0 0.0
        %591 = vmatpush1.msra.mxu0 0.0
        %592 = vmatprep.subr.mxu0 0.0
        %593 = vmatpush1.msra.mxu0 0.0
        %594 = vmatprep.subr.mxu0 0.0
        %595 = vmatpush1.msra.mxu0 0.0
        %596 = vmatprep.subr.mxu0 0.0
        %597 = vmatpush1.msra.mxu0 0.0
        %598 = vmatprep.subr.mxu0 0.0
        %599 = vmatpush1.msra.mxu0 0.0
        %600 = vmatprep.subr.mxu0 0.0
        %601 = vmatpush1.msra.mxu0 0.0
        %602 = vmatprep.subr.mxu0 0.0
        %603 = vmatpush1.msra.mxu0 0.0
        %604 = vmatprep.subr.mxu0 0.0
        %605 = vmatpush1.msra.mxu0 0.0
        %606 = vmatprep.subr.mxu0 0.0
        %607 = vmatpush1.msra.mxu0 0.0
        %608 = vmatprep.subr.mxu0 0.0
        %609 = vmatpush1.msra.mxu0 0.0
        %610 = vmatprep.subr.mxu0 0.0
        %611 = vmatpush1.msra.mxu0 %v424
        %612 = vmatprep.subr.mxu0 0.0
        %613 = vmatpush1.msra.mxu0 %v423
        %614 = vmatprep.subr.mxu0 0.0
        %615 = vmatpush1.msra.mxu0 %v422
        %616 = vmatprep.subr.mxu0 0.0
        %617 = vmatpush1.msra.mxu0 %v421
        %618 = vmatprep.subr.mxu0 0.0
        %619 = vmatpush2.msra.mxu0 0.0
        %620 = vmatprep.subr.mxu0 0.0
        %621 = vmatpush2.msra.mxu0 0.0
        %622 = vmatprep.subr.mxu0 0.0
        %623 = vmatpush2.msra.mxu0 0.0
        %624 = vmatprep.subr.mxu0 0.0
        %625 = vmatpush2.msra.mxu0 0.0
        %626 = vmatprep.subr.mxu0 0.0
        %627 = vmatpush2.msra.mxu0 0.0
        %628 = vmatprep.subr.mxu0 0.0
        %629 = vmatpush2.msra.mxu0 0.0
        %630 = vmatprep.subr.mxu0 0.0
        %631 = vmatpush2.msra.mxu0 0.0
        %632 = vmatprep.subr.mxu0 0.0
        %633 = vmatpush2.msra.mxu0 0.0
        %634 = vmatprep.subr.mxu0 0.0
        %635 = vmatpush2.msra.mxu0 0.0
        %636 = vmatprep.subr.mxu0 0.0
        %637 = vmatpush2.msra.mxu0 0.0
        %638 = vmatprep.subr.mxu0 0.0
        %639 = vmatpush2.msra.mxu0 0.0
        %640 = vmatprep.subr.mxu0 0.0
        %641 = vmatpush2.msra.mxu0 0.0
        %642 = vmatprep.subr.mxu0 0.0
        %643 = vmatpush2.msra.mxu0 0.0
        %644 = vmatprep.subr.mxu0 0.0
        %645 = vmatpush2.msra.mxu0 0.0
        %646 = vmatprep.subr.mxu0 0.0
        %647 = vmatpush2.msra.mxu0 0.0
        %648 = vmatprep.subr.mxu0 0.0
        %649 = vmatpush2.msra.mxu0 0.0
        %650 = vmatprep.mubr.f32.mxu0 0.0
        %651 = vmatmul.mubr.f32.gmra.mxu0 %v432
        %v652 = vpop.f32.mrf.mxu0
        %v653 = vadd.f32 %v585, %v652
        %v654 = vpop.f32.mrf.mxu0
        %655 = vdwg.mxu0
        %656 = vst.msk [vmem:[%s407] sm:$0xff] %vm430, %v653
        %s657 = sand.u32 %s182, 1
        %s658 = scalar_lea.sflag [#allocation4], %s657
        %s659 = sand.u32 %s182, 1
        %s660 = smul.addr %s659, 8
        %s661 = scalar_lea.vmem [#allocation10], %s660
        %s662 = sand.u32 %s30, 1
        %s663 = scalar_lea.sflag [#allocation12], %s662
        %s664 = sand.u32 %s210, 1
        %s665 = smul.addr %s664, 8
        %s666 = scalar_lea.vmem [#allocation11], %s665
        %s667 = sand.u32 %s30, 1
        %s668 = scalar_lea.sflag [#allocation12], %s667
        %s669 = sand.u32 %s238, 1
        %s670 = smul.addr %s669, 8
        %s671 = scalar_lea.vmem [#allocation13], %s670
        // Predicated region
        $region57: #{tpu_custom_call.1} parent=39 // pred_check
          %p672 = pneg %p192
        $region58: #{tpu_custom_call.1} parent=39 // pred_check_branch
          %674 = sbr.rel (%p672) target = $region60
        $region59: #{tpu_custom_call.1} parent=39 // pred_region
          %s676 = ssub.s32 128, 128
          %677 = vsyncadd %s658, %s676
          %s678 = sadd.s32 %s34, %s35
          %s679 = smul.addr %s678, 128
          %s680 = scalar_lea.hbm %s5, %s679
          %s682 = sshll.u32 %s661, 4
          %s683 = int_to_ptr.vmem [resolvable:$true] %s682
          %685 = dma.vmem_to_hbm [thread:$0]  %s683, 128, %s680, %s658
        $region60: #{tpu_custom_call.1} parent=39 // pred_fallthru
          _
        // Predicated region
        $region61: #{tpu_custom_call.1} parent=39 // pred_check
          %p686 = pneg %p220
        $region62: #{tpu_custom_call.1} parent=39 // pred_check_branch
          %688 = sbr.rel (%p686) target = $region64
        $region63: #{tpu_custom_call.1} parent=39 // pred_region
          %s690 = ssub.s32 128, 128
          %691 = vsyncadd %s663, %s690
          %s692 = sadd.s32 %s34, %s35
          %s693 = smul.addr %s692, 128
          %s694 = scalar_lea.hbm %s6, %s693
          %s696 = sshll.u32 %s666, 4
          %s697 = int_to_ptr.vmem [resolvable:$true] %s696
          %699 = dma.vmem_to_hbm [thread:$0]  %s697, 128, %s694, %s663
        $region64: #{tpu_custom_call.1} parent=39 // pred_fallthru
          _
        // Predicated region
        $region65: #{tpu_custom_call.1} parent=39 // pred_check
          %p700 = pneg %p248
        $region66: #{tpu_custom_call.1} parent=39 // pred_check_branch
          %702 = sbr.rel (%p700) target = $region68
        $region67: #{tpu_custom_call.1} parent=39 // pred_region
          %s704 = ssub.s32 128, 128
          %705 = vsyncadd %s668, %s704
          %s706 = sadd.s32 %s34, %s35
          %s707 = smul.addr %s706, 128
          %s708 = scalar_lea.hbm %s7, %s707
          %s710 = sshll.u32 %s671, 4
          %s711 = int_to_ptr.vmem [resolvable:$true] %s710
          %713 = dma.vmem_to_hbm [thread:$0]  %s711, 128, %s708, %s668
        $region68: #{tpu_custom_call.1} parent=39 // pred_fallthru
          _
      $region40: #{tpu_custom_call.1} parent=5 // pred_fallthru
        _
      %p714 = scmp.le.s32.totalorder 2, %s25
      // Predicated region
      $region69: #{tpu_custom_call.1} parent=5 // pred_check
        %p715 = pneg %p714
      $region70: #{tpu_custom_call.1} parent=5 // pred_check_branch
        %717 = sbr.rel (%p715) target = $region72
      $region71: #{tpu_custom_call.1} parent=5 // pred_region
        %s718 = ssub.s32 %s25, 2
        // Predicated region
        $region73: #{tpu_custom_call.1} parent=71 // pred_check
          %p719 = pneg %p198
        $region74: #{tpu_custom_call.1} parent=71 // pred_check_branch
          %721 = sbr.rel (%p719) target = $region76
        $region75: #{tpu_custom_call.1} parent=71 // pred_region
          %s722 = sand.u32 %s183, 1
          %s723 = scalar_lea.sflag [#allocation4], %s722
          %s724 = sand.u32 %s183, 1
          %s725 = smul.addr %s724, 8
          %s726 = scalar_lea.vmem [#allocation10], %s725
          %727 = dma.done %s723, 128
        $region76: #{tpu_custom_call.1} parent=71 // pred_fallthru
          _
        // Predicated region
        $region77: #{tpu_custom_call.1} parent=71 // pred_check
          %p728 = pneg %p226
        $region78: #{tpu_custom_call.1} parent=71 // pred_check_branch
          %730 = sbr.rel (%p728) target = $region80
        $region79: #{tpu_custom_call.1} parent=71 // pred_region
          %s731 = sand.u32 %s31, 1
          %s732 = scalar_lea.sflag [#allocation12], %s731
          %s733 = sand.u32 %s211, 1
          %s734 = smul.addr %s733, 8
          %s735 = scalar_lea.vmem [#allocation11], %s734
          %736 = dma.done %s732, 128
        $region80: #{tpu_custom_call.1} parent=71 // pred_fallthru
          _
        // Predicated region
        $region81: #{tpu_custom_call.1} parent=71 // pred_check
          %p737 = pneg %p254
        $region82: #{tpu_custom_call.1} parent=71 // pred_check_branch
          %739 = sbr.rel (%p737) target = $region84
        $region83: #{tpu_custom_call.1} parent=71 // pred_region
          %s740 = sand.u32 %s31, 1
          %s741 = scalar_lea.sflag [#allocation12], %s740
          %s742 = sand.u32 %s239, 1
          %s743 = smul.addr %s742, 8
          %s744 = scalar_lea.vmem [#allocation13], %s743
          %745 = dma.done %s741, 128
        $region84: #{tpu_custom_call.1} parent=71 // pred_fallthru
          _
      $region72: #{tpu_custom_call.1} parent=5 // pred_fallthru
        _
    $region6: #{tpu_custom_call.1} parent=1 // loop_footer
      %s29 = sadd.s32 1, %s25
    $region7: #{tpu_custom_call.1} parent=1 // loop_footer_branch
      %24 = sbr.rel target = $region3
    $region8: #{tpu_custom_call.1} parent=1 // loop_exit
      _
    %746 = vsyncpa [#allocation3], 1
    %s747 = scalar_lea.sflag [#allocation3], 1
    %748 = vsyncpa %s747, 1
    %749 = vsyncpa [#allocation6], 1
    %750 = vsyncpa [#allocation9], 1
    %751 = vsyncpa [#allocation4], 1
    %s752 = scalar_lea.sflag [#allocation4], 1
    %753 = vsyncpa %s752, 1
    %754 = vsyncpa [#allocation12], 1
    %s755 = scalar_lea.sflag [#allocation12], 1
    %756 = vsyncpa %s755, 1

</llo_original>
